<compile_context>
chip_gen: v6e
topology: v6e:2x2x1
jax: 0.10.0
libtpu: 0.0.40
codegen_flags: <defaults>
</compile_context>

<pallas_src>
import functools

import jax
import jax.numpy as jnp
from jax import lax
from jax.experimental import pallas as pl
from jax.experimental.pallas import tpu as pltpu


def _moco_head_kernel(q_ref, k_ref, queue_ref, lpos_ref, lneg_ref, kn_ref,
                      qn_scratch, *, inv_t):
    """Grid step (i, j): batch tile i  x  queue-column tile j.

    q_ref, k_ref : (TN, C)   raw encoder features (query / key), revisited over j
    queue_ref    : (C, TK)   one lane-tile of the negative-key queue (streamed)
    lpos_ref     : (TN, 1)   positive logits / T   (written once, at j == 0)
    lneg_ref     : (TN, TK)  negative logits / T   (lane-dense, K on lanes)
    kn_ref       : (TN, C)   normalized keys in queue dtype (written at j == 0)
    qn_scratch   : (TN, C)   1/T-scaled normalized queries, queue dtype (MXU LHS)
    """
    j = pl.program_id(1)

    @pl.when(j == 0)
    def _():
        q = q_ref[...].astype(jnp.float32)
        k = k_ref[...].astype(jnp.float32)
        # F.normalize(x, dim=1) == x * rsqrt(max(sum(x^2), eps^2)); rsqrt -> EUP.
        qn = q * lax.rsqrt(jnp.maximum(jnp.sum(q * q, axis=1, keepdims=True), 1e-24))
        kn = k * lax.rsqrt(jnp.maximum(jnp.sum(k * k, axis=1, keepdims=True), 1e-24))
        # Positive logit in f32 (VPU mul + cross-lane reduce), already / T.
        lpos_ref[...] = (jnp.sum(qn * kn, axis=1, keepdims=True) * inv_t
                         ).astype(lpos_ref.dtype)
        kn_ref[...] = kn.astype(kn_ref.dtype)
        # Fold 1/T into qn ONCE: every l_neg store below is a pure cast of the
        # MXU result (no extra (TN, TK) VPU multiply per grid step).
        qn_scratch[...] = (qn * inv_t).astype(qn_scratch.dtype)

    # Negative logits for this queue tile: (TN, C) @ (C, TK), f32 accumulation.
    # With a bf16 queue this runs on the native bf16 MXU path.
    lneg_ref[...] = jnp.dot(qn_scratch[...], queue_ref[...],
                            preferred_element_type=jnp.float32).astype(lneg_ref.dtype)


def _pick_tile_k(total, want, align=128):
    """Largest multiple of `align` dividing `total`, at most max(want, align).
    Falls back to the full dimension when no aligned divisor exists."""
    if total % align != 0:
        return total
    tk = max(align, (min(want, total) // align) * align)
    while total % tk != 0:
        tk -= align
    return tk


@functools.partial(jax.jit, static_argnames=("T", "tile_n", "tile_k"))
def moco_contrastive_head(q_feat, k_feat, queue, *, T=0.07, tile_n=256, tile_k=2048):
    """q_feat/k_feat: (N, C) encoder features; queue: (C, K) (f32 or bf16).

    Returns (l_pos (N, 1) f32, l_neg (N, K) f32, k_normalized (N, C) queue.dtype).
    l_pos / l_neg are already divided by T and returned separately so a fused
    loss can consume them without materializing cat([l_pos, l_neg]).
    """
    N, C = q_feat.shape
    Kq = queue.shape[1]
    qdt = queue.dtype

    # Batch tile: sublane-aligned (multiple of 8); single tile when N is small.
    tn = min(tile_n, ((N + 7) // 8) * 8)
    n_pad = pl.cdiv(N, tn) * tn
    if n_pad != N:
        # Padded rows are zero; max(sum_sq, eps^2) keeps them finite and they
        # are sliced off below.
        q_feat = jnp.pad(q_feat, ((0, n_pad - N), (0, 0)))
        k_feat = jnp.pad(k_feat, ((0, n_pad - N), (0, 0)))

    tk = _pick_tile_k(Kq, tile_k)
    grid = (n_pad // tn, Kq // tk)

    kernel = functools.partial(_moco_head_kernel, inv_t=1.0 / T)

    qbytes = jnp.dtype(qdt).itemsize
    fbytes = jnp.dtype(q_feat.dtype).itemsize
    # Rough per-step VMEM footprint (double-buffered pipeline) used to size the
    # scoped-VMEM limit; stay below v7x's 64 MiB physical VMEM.
    vmem_est = (2 * 2 * tn * C * fbytes        # q, k tiles
                + 2 * C * tk * qbytes          # queue tile
                + 2 * tn * tk * 4              # l_neg tile
                + 2 * tn * C * qbytes          # kn tile
                + tn * C * qbytes)             # qn scratch
    vmem_limit = int(min(60 * 2**20, max(32 * 2**20, 2 * vmem_est)))

    flops = 2 * n_pad * C * Kq + 8 * n_pad * C
    bytes_accessed = (2 * n_pad * C * fbytes
                      + (n_pad // tn) * C * Kq * qbytes   # queue streamed per batch tile
                      + n_pad * Kq * 4 + n_pad * C * qbytes + n_pad * 4)

    l_pos, l_neg, kn = pl.pallas_call(
        kernel,
        out_shape=(
            jax.ShapeDtypeStruct((n_pad, 1), jnp.float32),
            jax.ShapeDtypeStruct((n_pad, Kq), jnp.float32),
            jax.ShapeDtypeStruct((n_pad, C), qdt),
        ),
        grid_spec=pltpu.PrefetchScalarGridSpec(
            num_scalar_prefetch=0,
            grid=grid,
            in_specs=[
                pl.BlockSpec((tn, C), lambda i, j: (i, 0)),   # q tile (revisited over j)
                pl.BlockSpec((tn, C), lambda i, j: (i, 0)),   # k tile
                pl.BlockSpec((C, tk), lambda i, j: (0, j)),   # queue lane-tile (streamed)
            ],
            out_specs=[
                pl.BlockSpec((tn, 1), lambda i, j: (i, 0)),   # l_pos / T (resident over j)
                pl.BlockSpec((tn, tk), lambda i, j: (i, j)),  # l_neg / T (lane-dense)
                pl.BlockSpec((tn, C), lambda i, j: (i, 0)),   # normalized k (resident over j)
            ],
            scratch_shapes=[pltpu.VMEM((tn, C), qdt)],
        ),
        compiler_params=pltpu.CompilerParams(
            dimension_semantics=("parallel", "arbitrary"),
            vmem_limit_bytes=vmem_limit),
        cost_estimate=pl.CostEstimate(
            flops=flops, transcendentals=2 * n_pad, bytes_accessed=bytes_accessed),
    )(q_feat, k_feat, queue)

    return l_pos[:N], l_neg[:N], kn[:N]


@functools.partial(jax.jit, static_argnames=("T", "tile_n", "tile_k"),
                   donate_argnames=("queue",))
def moco_forward_train(embedding, q_feat, inter, k_feat, queue, queue_ptr,
                       *, T=0.07, tile_n=256, tile_k=2048):
    """Functional MoCo training forward (contrastive head + queue update).

    `embedding` / `inter` are encoder outputs passed through untouched (the
    base_encoder itself is an external module).  The in-place queue buffer
    update becomes a functional return of (new_queue, new_ptr); the queue
    argument is donated so the enqueue is done in place.
    """
    N = q_feat.shape[0]
    Kq = queue.shape[1]
    assert Kq % N == 0  # mirrors the PyTorch assert in _dequeue_and_enqueue

    l_pos, l_neg, kn = moco_contrastive_head(
        q_feat, k_feat, queue, T=T, tile_n=tile_n, tile_k=tile_k)

    # logits = cat([l_pos, l_neg], dim=1) only to match the module's return
    # value; a fused loss should consume (l_pos, l_neg) directly and skip this
    # extra HBM pass over the (N, K+1) logits.
    logits = jnp.concatenate([l_pos, l_neg], axis=1)
    labels = jnp.zeros((N,), jnp.int32)

    # _dequeue_and_enqueue: queue[:, ptr:ptr+N] = k_normalized.T.  With the
    # donated queue buffer XLA updates it in place (only N columns written,
    # instead of copying the whole (C, K) queue).
    new_queue = lax.dynamic_update_slice(queue, kn.T, (0, queue_ptr))
    new_ptr = (queue_ptr + N) % Kq
    return embedding, logits, labels, inter, new_queue, new_ptr


def _reference(q, k, queue_f32, ptr, T):
    """Pure-JAX reference of the PyTorch training forward (contrastive head)."""
    qn = q / jnp.maximum(jnp.linalg.norm(q, axis=1, keepdims=True), 1e-12)
    kn = k / jnp.maximum(jnp.linalg.norm(k, axis=1, keepdims=True), 1e-12)
    l_pos = jnp.einsum('nc,nc->n', qn, kn)[:, None]
    l_neg = jnp.einsum('nc,ck->nk', qn, queue_f32, precision=lax.Precision.HIGHEST)
    logits = jnp.concatenate([l_pos, l_neg], axis=1) / T
    labels = jnp.zeros((q.shape[0],), jnp.int32)
    new_queue = lax.dynamic_update_slice(queue_f32, kn.T, (0, ptr))
    new_ptr = (ptr + q.shape[0]) % queue_f32.shape[1]
    return logits, labels, new_queue, new_ptr


if __name__ == "__main__":
    key = jax.random.PRNGKey(0)
    # MoCo defaults: dim=256, K=3*256=768, T=0.07; small batch of 8.
    batch, dim, K, T = 8, 256, 3 * 256, 0.07
    ks = jax.random.split(key, 5)

    # Stand-ins for base_encoder outputs (encoder is an external module).
    q_feat = jax.random.normal(ks[0], (batch, dim), jnp.float32)
    k_feat = jax.random.normal(ks[1], (batch, dim), jnp.float32)
    embedding = jax.random.normal(ks[2], (batch, 64), jnp.float32)    # pass-through
    inter = jax.random.normal(ks[3], (batch, 32, 4, 4), jnp.float32)  # pass-through

    # register_buffer('queue', randn(dim, K)); normalized along dim=0.
    # The queue lives at rest in bf16 (halves queue HBM bytes, bf16 MXU path).
    queue_init = jax.random.normal(ks[4], (dim, K), jnp.float32)
    queue_init = queue_init / jnp.linalg.norm(queue_init, axis=0, keepdims=True)
    queue = queue_init.astype(jnp.bfloat16)
    queue_f32 = queue.astype(jnp.float32)       # reference sees the bf16-rounded values
    queue_ptr = jnp.array(16, jnp.int32)        # non-zero ptr exercises the enqueue offset

    # Compute the reference first: the queue buffer is donated to the forward call.
    ref_logits, ref_labels, ref_queue, ref_ptr = _reference(
        q_feat, k_feat, queue_f32, queue_ptr, T)
    ref_logits = jax.block_until_ready(ref_logits)

    emb_o, logits, labels, inter_o, new_queue, new_ptr = moco_forward_train(
        embedding, q_feat, inter, k_feat, queue, queue_ptr,
        T=T, tile_n=256, tile_k=256)   # tile_k=256 -> 3 queue lane-tiles in the demo
    logits = jax.block_until_ready(logits)

    assert logits.shape == (batch, K + 1), logits.shape
    # Column 0 (l_pos) is computed fully in f32 -> tight tolerance; l_neg goes
    # through the bf16 queue / bf16 LHS MXU path -> looser tolerance.
    assert jnp.allclose(logits[:, :1], ref_logits[:, :1], atol=1e-3, rtol=1e-3), \
        float(jnp.max(jnp.abs(logits[:, :1] - ref_logits[:, :1])))
    assert jnp.allclose(logits[:, 1:], ref_logits[:, 1:], atol=3e-2, rtol=3e-2), \
        float(jnp.max(jnp.abs(logits[:, 1:] - ref_logits[:, 1:])))
    assert jnp.array_equal(labels, ref_labels)
    assert jnp.allclose(new_queue.astype(jnp.float32), ref_queue, atol=2e-3, rtol=2e-3), \
        float(jnp.max(jnp.abs(new_queue.astype(jnp.float32) - ref_queue)))
    assert int(new_ptr) == int(ref_ptr)
    assert emb_o.shape == embedding.shape and inter_o.shape == inter.shape

    print("KERNEL_OK")
</pallas_src>

<mosaic_0001>
module attributes {stable_mosaic.version = 11 : i64} {
  func.func @_moco_head_kernel(%arg0: i32, %arg1: i32, %arg2: memref<8x256xf32, #tpu.memory_space<vmem>>, %arg3: memref<8x256xf32, #tpu.memory_space<vmem>>, %arg4: memref<256x256xbf16, #tpu.memory_space<vmem>>, %arg5: memref<8x1xf32, #tpu.memory_space<vmem>>, %arg6: memref<8x256xf32, #tpu.memory_space<vmem>>, %arg7: memref<8x256xbf16, #tpu.memory_space<vmem>>, %arg8: memref<8x256xbf16, #tpu.memory_space<vmem>>) attributes {dimension_semantics = [#tpu.dimension_semantics<parallel>, #tpu.dimension_semantics<arbitrary>], iteration_bounds = array<i64: 1, 3>, scalar_prefetch = 0 : i64, scratch_operands = 1 : i64, tpu.core_type = #tpu.core_type<tc>, window_params = [{transform_indices = @transform_0, window_bounds = array<i64: 8, 256>}, {transform_indices = @transform_1, window_bounds = array<i64: 8, 256>}, {transform_indices = @transform_2, window_bounds = array<i64: 256, 256>}, {transform_indices = @transform_3, window_bounds = array<i64: 8, 1>}, {transform_indices = @transform_4, window_bounds = array<i64: 8, 256>}, {transform_indices = @transform_5, window_bounds = array<i64: 8, 256>}]} {
    %c0_i32 = arith.constant 0 : i32
    %0 = arith.cmpi eq, %arg1, %c0_i32 : i32
    %1 = arith.extui %0 : i1 to i32
    %c0_i32_0 = arith.constant 0 : i32
    %2 = arith.cmpi ne, %1, %c0_i32_0 : i32
    scf.if %2 {
      %c0_6 = arith.constant 0 : index
      %c0_7 = arith.constant 0 : index
      %7 = vector.load %arg2[%c0_6, %c0_7] : memref<8x256xf32, #tpu.memory_space<vmem>>, vector<8x256xf32>
      %c0_8 = arith.constant 0 : index
      %c0_9 = arith.constant 0 : index
      %8 = vector.load %arg3[%c0_8, %c0_9] : memref<8x256xf32, #tpu.memory_space<vmem>>, vector<8x256xf32>
      %9 = arith.mulf %7, %7 : vector<8x256xf32>
      %cst_10 = arith.constant dense<0.000000e+00> : vector<8xf32>
      %10 = vector.multi_reduction <add>, %9, %cst_10 [1] : vector<8x256xf32> to vector<8xf32>
      %11 = vector.shape_cast %10 : vector<8xf32> to vector<8x1xf32>
      %cst_11 = arith.constant 1.000000e-24 : f32
      %12 = vector.broadcast %cst_11 : f32 to vector<8x1xf32>
      %13 = arith.maximumf %11, %12 : vector<8x1xf32>
      %14 = math.rsqrt %13 : vector<8x1xf32>
      %15 = vector.broadcast %14 : vector<8x1xf32> to vector<8x256xf32>
      %16 = arith.mulf %7, %15 : vector<8x256xf32>
      %17 = arith.mulf %8, %8 : vector<8x256xf32>
      %cst_12 = arith.constant dense<0.000000e+00> : vector<8xf32>
      %18 = vector.multi_reduction <add>, %17, %cst_12 [1] : vector<8x256xf32> to vector<8xf32>
      %19 = vector.shape_cast %18 : vector<8xf32> to vector<8x1xf32>
      %cst_13 = arith.constant 1.000000e-24 : f32
      %20 = vector.broadcast %cst_13 : f32 to vector<8x1xf32>
      %21 = arith.maximumf %19, %20 : vector<8x1xf32>
      %22 = math.rsqrt %21 : vector<8x1xf32>
      %23 = vector.broadcast %22 : vector<8x1xf32> to vector<8x256xf32>
      %24 = arith.mulf %8, %23 : vector<8x256xf32>
      %25 = arith.mulf %16, %24 : vector<8x256xf32>
      %cst_14 = arith.constant dense<0.000000e+00> : vector<8xf32>
      %26 = vector.multi_reduction <add>, %25, %cst_14 [1] : vector<8x256xf32> to vector<8xf32>
      %27 = vector.shape_cast %26 : vector<8xf32> to vector<8x1xf32>
      %cst_15 = arith.constant 14.2857141 : f32
      %28 = vector.broadcast %cst_15 : f32 to vector<8x1xf32>
      %29 = arith.mulf %27, %28 : vector<8x1xf32>
      %c0_16 = arith.constant 0 : index
      %c0_17 = arith.constant 0 : index
      %30 = vector.load %arg5[%c0_16, %c0_17] : memref<8x1xf32, #tpu.memory_space<vmem>>, vector<8x1xf32>
      tpu.vector_store %arg5[%c0_16, %c0_17], %29 {strides = array<i32>} : memref<8x1xf32, #tpu.memory_space<vmem>>, vector<8x1xf32>,
      %31 = arith.truncf %24 : vector<8x256xf32> to vector<8x256xbf16>
      %c0_18 = arith.constant 0 : index
      %c0_19 = arith.constant 0 : index
      %32 = vector.load %arg7[%c0_18, %c0_19] : memref<8x256xbf16, #tpu.memory_space<vmem>>, vector<8x256xbf16>
      tpu.vector_store %arg7[%c0_18, %c0_19], %31 {strides = array<i32>} : memref<8x256xbf16, #tpu.memory_space<vmem>>, vector<8x256xbf16>,
      %cst_20 = arith.constant 14.2857141 : f32
      %33 = vector.broadcast %cst_20 : f32 to vector<8x256xf32>
      %34 = arith.mulf %16, %33 : vector<8x256xf32>
      %35 = arith.truncf %34 : vector<8x256xf32> to vector<8x256xbf16>
      %c0_21 = arith.constant 0 : index
      %c0_22 = arith.constant 0 : index
      %36 = vector.load %arg8[%c0_21, %c0_22] : memref<8x256xbf16, #tpu.memory_space<vmem>>, vector<8x256xbf16>
      tpu.vector_store %arg8[%c0_21, %c0_22], %35 {strides = array<i32>} : memref<8x256xbf16, #tpu.memory_space<vmem>>, vector<8x256xbf16>,
    } else {
    }
    %c0 = arith.constant 0 : index
    %c0_1 = arith.constant 0 : index
    %3 = vector.load %arg8[%c0, %c0_1] : memref<8x256xbf16, #tpu.memory_space<vmem>>, vector<8x256xbf16>
    %c0_2 = arith.constant 0 : index
    %c0_3 = arith.constant 0 : index
    %4 = vector.load %arg4[%c0_2, %c0_3] : memref<256x256xbf16, #tpu.memory_space<vmem>>, vector<256x256xbf16>
    %cst = arith.constant dense<0.000000e+00> : vector<8x256xf32>
    %5 = tpu.matmul %3, %4, %cst {dimension_numbers = #tpu.dot_dimension_numbers<[1], [0], [0], [1], [0, 0, 1, 1], [], []>} : vector<8x256xbf16>, vector<256x256xbf16>, vector<8x256xf32> -> vector<8x256xf32>
    %c0_4 = arith.constant 0 : index
    %c0_5 = arith.constant 0 : index
    %6 = vector.load %arg6[%c0_4, %c0_5] : memref<8x256xf32, #tpu.memory_space<vmem>>, vector<8x256xf32>
    tpu.vector_store %arg6[%c0_4, %c0_5], %5 {strides = array<i32>} : memref<8x256xf32, #tpu.memory_space<vmem>>, vector<8x256xf32>,
    return
  }
  func.func @transform_0(%arg0: i32, %arg1: i32) -> (i32, i32) {
    %c0_i32 = arith.constant 0 : i32
    %c0_i32_0 = arith.constant 0 : i32
    return %arg0, %c0_i32 : i32, i32
  }
  func.func @transform_1(%arg0: i32, %arg1: i32) -> (i32, i32) {
    %c0_i32 = arith.constant 0 : i32
    %c0_i32_0 = arith.constant 0 : i32
    return %arg0, %c0_i32 : i32, i32
  }
  func.func @transform_2(%arg0: i32, %arg1: i32) -> (i32, i32) {
    %c0_i32 = arith.constant 0 : i32
    %c0_i32_0 = arith.constant 0 : i32
    return %c0_i32, %arg1 : i32, i32
  }
  func.func @transform_3(%arg0: i32, %arg1: i32) -> (i32, i32) {
    %c0_i32 = arith.constant 0 : i32
    %c0_i32_0 = arith.constant 0 : i32
    return %arg0, %c0_i32 : i32, i32
  }
  func.func @transform_4(%arg0: i32, %arg1: i32) -> (i32, i32) {
    %c0_i32 = arith.constant 0 : i32
    return %arg0, %arg1 : i32, i32
  }
  func.func @transform_5(%arg0: i32, %arg1: i32) -> (i32, i32) {
    %c0_i32 = arith.constant 0 : i32
    %c0_i32_0 = arith.constant 0 : i32
    return %arg0, %c0_i32 : i32, i32
  }
}

</mosaic_0001>

<llo_original>
// kernel: moco_contrastive_head.1
$region0: #{moco_contrastive_head.1}
  #allocation0 [shape = 'u32[]', space=smem, size = 0x4, offset = 0x4, fixed_abs, tag = 'smem constant byte address 0x4 - core index']
  #allocation1 [shape = 'u32[144,128]{1,0:T(1,128)}', space=vmem, size = 0x12000, scoped, tag = 'internal scratch']
  #allocation2 [shape = 'bf16[8,256]{1,0:T(8,128)(2,1)}', space=vmem, size = 0x1000, scoped, tag = 'scratch operand']
  %s0 = inlined_call_operand.hbm [shape: f32[8,256], index: 0, kind: input, shape index: {}]
  %s1 = inlined_call_operand.hbm [shape: f32[8,256], index: 1, kind: input, shape index: {}]
  %s2 = inlined_call_operand.hbm [shape: bf16[256,768], index: 2, kind: input, shape index: {}]
  %s3 = inlined_call_operand.vmem [shape: f32[8,1], index: 3, kind: output, shape index: {0}]
  %s4 = inlined_call_operand.hbm [shape: f32[8,768], index: 4, kind: output, shape index: {1}]
  %s5 = inlined_call_operand.hbm [shape: bf16[8,256], index: 5, kind: output, shape index: {2}]
  %6 = xla_tuple %s3, %s4, %s5
  %s7 = sld [smem:[#allocation0]]
  $region77: #{moco_contrastive_head.1} parent=0
    _
  %s9 = ssub.s32 1, %s7
  %s10 = scalar_select 0, %s9, %s7
  $region1: #{moco_contrastive_head.1} parent=0
    #allocation3 [shape = 'u8[8192]{0}', space=vmem, size = 0x2000, scoped, tag = 'input window, operand 0, single buffered']
    #allocation4 [shape = 's32[2]{0}', space=sflag, size = 0x8, scoped, tag = 'scoped memory for moco_contrastive_head.1']
    #allocation5 [shape = 's32[2]{0}', space=sflag, size = 0x8, scoped, tag = 'scoped memory for moco_contrastive_head.1']
    #allocation6 [shape = 'u8[8192]{0}', space=vmem, size = 0x2000, scoped, tag = 'input window, operand 1, single buffered']
    #allocation7 [shape = 's32[1]{0}', space=sflag, size = 0x4, scoped, tag = 'scoped memory for moco_contrastive_head.1']
    #allocation8 [shape = 'u8[262144]{0}', space=vmem, size = 0x40000, scoped, tag = 'input window, operand 2']
    #allocation9 [shape = 'u8[16384]{0}', space=vmem, size = 0x4000, scoped, tag = 'output window, operand 1']
    #allocation10 [shape = 'u8[4096]{0}', space=vmem, size = 0x1000, scoped, tag = 'output window, operand 2, single buffered']
    #allocation11 [shape = 's32[1]{0}', space=sflag, size = 0x4, scoped, tag = 'scoped memory for moco_contrastive_head.1']
    %11 = vsyncpa [#allocation4], 0
    %12 = vsyncpa [#allocation7], 0
    %13 = vsyncpa [#allocation5], 0
    %s14 = scalar_lea.sflag [#allocation5], 1
    %15 = vsyncpa %s14, 0
    %16 = vsyncpa [#allocation11], 0
    loop: start=0, step=1, limit=5
    $region2: #{moco_contrastive_head.1} parent=1 // loop_pre_header
      _
    $region3: #{moco_contrastive_head.1} parent=1 // loop_header
      %s18 = sphi 0, %s22
      %p19 = scmp.ge.s32.totalorder %s18, 5
      %s25 = sphi 0, %s37
      %s26 = sphi 0, %s33
      %s27 = sphi 0, %s25
      %s28 = sphi 0, %s26
      %s29 = sphi 0, %s27
      %s30 = sphi 0, %s28
      %s40 = sphi 0, %s42
      %s43 = sphi 0, %s40
      %s44 = sphi 0, %s43
      %s60 = sphi 0, %s44
      %s66 = sphi 0, %s68
      %s69 = sphi 0, %s66
      %s70 = sphi 0, %s69
      %s86 = sphi 0, %s70
      %s92 = sphi 0, %s94
      %s95 = sphi 0, %s92
      %s96 = sphi 0, %s95
      %s112 = sphi 0, %s96
      %s118 = sphi 0, %s120
      %s121 = sphi 0, %s118
      %s122 = sphi 0, %s121
      %s138 = sphi 0, %s122
      %s146 = sphi 0, %s148
      %s149 = sphi 0, %s146
      %s150 = sphi 0, %s149
      %s166 = sphi 0, %s150
      %s172 = sphi 0, %s174
      %s175 = sphi 0, %s172
      %s176 = sphi 0, %s175
      %s192 = sphi 0, %s176
    $region4: #{moco_contrastive_head.1} parent=1 // loop_header_branch
      %21 = sbr.rel (%p19) target = $region8
    $region5: #{moco_contrastive_head.1} parent=1 // loop_body
      %s23 = ssub.s32 %s18, 1
      %s24 = ssub.s32 %s18, 2
      %s31 = sadd.s32 1, %s26
      %p32 = scmp.ge.s32.totalorder %s31, 3
      %s33 = scalar_select %p32, 0, %s31
      %s34 = sadd.s32 1, %s25
      %s35 = scalar_select %p32, %s34, %s25
      %p36 = scmp.ge.s32.totalorder %s35, 1
      %s37 = scalar_select %p36, 0, %s35
      %s38 = ssub.s32 %s25, %s37
      %p39 = scmp.eq.s32.totalorder %s38, 0
      %s41 = sadd.s32 %s40, 1
      %s42 = scalar_select %p39, %s40, %s41
      %p45 = pneg %p39
      %p46 = scmp.eq.s32.totalorder %s18, 2
      %p47 = por %p45, %p46
      %p48 = scmp.ne.s32.totalorder %s40, %s43
      %p49 = scmp.eq.s32.totalorder %s18, 0
      %p50 = por %p48, %p49
      %p51 = scmp.ne.s32.totalorder %s40, %s43
      %p52 = scmp.eq.s32.totalorder %s23, 2
      %p53 = por %p51, %p52
      %p54 = scmp.ne.s32.totalorder %s43, %s44
      %p55 = scmp.eq.s32.totalorder %s23, 0
      %p56 = por %p54, %p55
      %p57 = scmp.ne.s32.totalorder %s43, %s44
      %p58 = scmp.eq.s32.totalorder %s24, 2
      %p59 = por %p57, %p58
      %p61 = scmp.ne.s32.totalorder %s44, %s60
      %p62 = scmp.eq.s32.totalorder %s24, 0
      %p63 = por %p61, %p62
      %s64 = ssub.s32 %s25, %s37
      %p65 = scmp.eq.s32.totalorder %s64, 0
      %s67 = sadd.s32 %s66, 1
      %s68 = scalar_select %p65, %s66, %s67
      %p71 = pneg %p65
      %p72 = scmp.eq.s32.totalorder %s18, 2
      %p73 = por %p71, %p72
      %p74 = scmp.ne.s32.totalorder %s66, %s69
      %p75 = scmp.eq.s32.totalorder %s18, 0
      %p76 = por %p74, %p75
      %p77 = scmp.ne.s32.totalorder %s66, %s69
      %p78 = scmp.eq.s32.totalorder %s23, 2
      %p79 = por %p77, %p78
      %p80 = scmp.ne.s32.totalorder %s69, %s70
      %p81 = scmp.eq.s32.totalorder %s23, 0
      %p82 = por %p80, %p81
      %p83 = scmp.ne.s32.totalorder %s69, %s70
      %p84 = scmp.eq.s32.totalorder %s24, 2
      %p85 = por %p83, %p84
      %p87 = scmp.ne.s32.totalorder %s70, %s86
      %p88 = scmp.eq.s32.totalorder %s24, 0
      %p89 = por %p87, %p88
      %s90 = ssub.s32 %s26, %s33
      %p91 = scmp.eq.s32.totalorder %s90, 0
      %s93 = sadd.s32 %s92, 1
      %s94 = scalar_select %p91, %s92, %s93
      %p97 = pneg %p91
      %p98 = scmp.eq.s32.totalorder %s18, 2
      %p99 = por %p97, %p98
      %p100 = scmp.ne.s32.totalorder %s92, %s95
      %p101 = scmp.eq.s32.totalorder %s18, 0
      %p102 = por %p100, %p101
      %p103 = scmp.ne.s32.totalorder %s92, %s95
      %p104 = scmp.eq.s32.totalorder %s23, 2
      %p105 = por %p103, %p104
      %p106 = scmp.ne.s32.totalorder %s95, %s96
      %p107 = scmp.eq.s32.totalorder %s23, 0
      %p108 = por %p106, %p107
      %p109 = scmp.ne.s32.totalorder %s95, %s96
      %p110 = scmp.eq.s32.totalorder %s24, 2
      %p111 = por %p109, %p110
      %p113 = scmp.ne.s32.totalorder %s96, %s112
      %p114 = scmp.eq.s32.totalorder %s24, 0
      %p115 = por %p113, %p114
      %s116 = ssub.s32 %s25, %s37
      %p117 = scmp.eq.s32.totalorder %s116, 0
      %s119 = sadd.s32 %s118, 1
      %s120 = scalar_select %p117, %s118, %s119
      %p123 = pneg %p117
      %p124 = scmp.eq.s32.totalorder %s18, 2
      %p125 = por %p123, %p124
      %p126 = scmp.ne.s32.totalorder %s118, %s121
      %p127 = scmp.eq.s32.totalorder %s18, 0
      %p128 = por %p126, %p127
      %p129 = scmp.ne.s32.totalorder %s118, %s121
      %p130 = scmp.eq.s32.totalorder %s23, 2
      %p131 = por %p129, %p130
      %p132 = scmp.ne.s32.totalorder %s121, %s122
      %p133 = scmp.eq.s32.totalorder %s23, 0
      %p134 = por %p132, %p133
      %p135 = scmp.ne.s32.totalorder %s121, %s122
      %p136 = scmp.eq.s32.totalorder %s24, 2
      %p137 = por %p135, %p136
      %p139 = scmp.ne.s32.totalorder %s122, %s138
      %p140 = scmp.eq.s32.totalorder %s24, 0
      %p141 = por %p139, %p140
      %s142 = ssub.s32 %s25, %s37
      %s143 = ssub.s32 %s26, %s33
      %s144 = sor.u32 %s142, %s143
      %p145 = scmp.eq.s32.totalorder %s144, 0
      %s147 = sadd.s32 %s146, 1
      %s148 = scalar_select %p145, %s146, %s147
      %p151 = pneg %p145
      %p152 = scmp.eq.s32.totalorder %s18, 2
      %p153 = por %p151, %p152
      %p154 = scmp.ne.s32.totalorder %s146, %s149
      %p155 = scmp.eq.s32.totalorder %s18, 0
      %p156 = por %p154, %p155
      %p157 = scmp.ne.s32.totalorder %s146, %s149
      %p158 = scmp.eq.s32.totalorder %s23, 2
      %p159 = por %p157, %p158
      %p160 = scmp.ne.s32.totalorder %s149, %s150
      %p161 = scmp.eq.s32.totalorder %s23, 0
      %p162 = por %p160, %p161
      %p163 = scmp.ne.s32.totalorder %s149, %s150
      %p164 = scmp.eq.s32.totalorder %s24, 2
      %p165 = por %p163, %p164
      %p167 = scmp.ne.s32.totalorder %s150, %s166
      %p168 = scmp.eq.s32.totalorder %s24, 0
      %p169 = por %p167, %p168
      %s170 = ssub.s32 %s25, %s37
      %p171 = scmp.eq.s32.totalorder %s170, 0
      %s173 = sadd.s32 %s172, 1
      %s174 = scalar_select %p171, %s172, %s173
      %p177 = pneg %p171
      %p178 = scmp.eq.s32.totalorder %s18, 2
      %p179 = por %p177, %p178
      %p180 = scmp.ne.s32.totalorder %s172, %s175
      %p181 = scmp.eq.s32.totalorder %s18, 0
      %p182 = por %p180, %p181
      %p183 = scmp.ne.s32.totalorder %s172, %s175
      %p184 = scmp.eq.s32.totalorder %s23, 2
      %p185 = por %p183, %p184
      %p186 = scmp.ne.s32.totalorder %s175, %s176
      %p187 = scmp.eq.s32.totalorder %s23, 0
      %p188 = por %p186, %p187
      %p189 = scmp.ne.s32.totalorder %s175, %s176
      %p190 = scmp.eq.s32.totalorder %s24, 2
      %p191 = por %p189, %p190
      %p193 = scmp.ne.s32.totalorder %s176, %s192
      %p194 = scmp.eq.s32.totalorder %s24, 0
      %p195 = por %p193, %p194
      %p196 = scmp.le.s32.totalorder 1, %s18
      %p197 = scmp.lt.s32.totalorder %s18, 4
      %p198 = pnand %p196, %p197
      %p199 = pneg %p198
      // Predicated region
      $region9: #{moco_contrastive_head.1} parent=5 // pred_check
        _
      $region10: #{moco_contrastive_head.1} parent=5 // pred_check_branch
        %201 = sbr.rel (%p198) target = $region12
      $region11: #{moco_contrastive_head.1} parent=5 // pred_region
        %s202 = ssub.s32 %s18, 1
        // Predicated region
        $region13: #{moco_contrastive_head.1} parent=11 // pred_check
          %p203 = pneg %p56
        $region14: #{moco_contrastive_head.1} parent=11 // pred_check_branch
          %205 = sbr.rel (%p203) target = $region16
        $region15: #{moco_contrastive_head.1} parent=11 // pred_region
          %s207 = ssub.s32 256, 256
          %208 = vsyncadd [#allocation4], %s207
          %s209 = smul.addr %s27, 2
          %s210 = smul.addr %s209, 128
          %s211 = scalar_lea.hbm %s0, %s210
          %s213 = sshll.u32 [#allocation3], 4
          %s214 = int_to_ptr.vmem [resolvable:$true] %s213
          %216 = dma.hbm_to_vmem [thread:$0]  %s211, 256, %s214, [#allocation4]
        $region16: #{moco_contrastive_head.1} parent=11 // pred_fallthru
          _
        // Predicated region
        $region17: #{moco_contrastive_head.1} parent=11 // pred_check
          %p217 = pneg %p82
        $region18: #{moco_contrastive_head.1} parent=11 // pred_check_branch
          %219 = sbr.rel (%p217) target = $region20
        $region19: #{moco_contrastive_head.1} parent=11 // pred_region
          %s221 = ssub.s32 256, 256
          %222 = vsyncadd [#allocation7], %s221
          %s223 = smul.addr %s27, 2
          %s224 = smul.addr %s223, 128
          %s225 = scalar_lea.hbm %s1, %s224
          %s227 = sshll.u32 [#allocation6], 4
          %s228 = int_to_ptr.vmem [resolvable:$true] %s227
          %230 = dma.hbm_to_vmem [thread:$0]  %s225, 256, %s228, [#allocation7]
        $region20: #{moco_contrastive_head.1} parent=11 // pred_fallthru
          _
      $region12: #{moco_contrastive_head.1} parent=5 // pred_fallthru
        _
      %p231 = scmp.lt.s32.totalorder %s18, 3
      // Predicated region
      $region21: #{moco_contrastive_head.1} parent=5 // pred_check
        %p232 = pneg %p231
      $region22: #{moco_contrastive_head.1} parent=5 // pred_check_branch
        %234 = sbr.rel (%p232) target = $region24
      $region23: #{moco_contrastive_head.1} parent=5 // pred_region
        // Predicated region
        $region25: #{moco_contrastive_head.1} parent=23 // pred_check
          %p235 = pneg %p102
        $region26: #{moco_contrastive_head.1} parent=23 // pred_check_branch
          %237 = sbr.rel (%p235) target = $region28
        $region27: #{moco_contrastive_head.1} parent=23 // pred_region
          %s238 = sand.u32 %s18, 1
          %s239 = scalar_lea.sflag [#allocation4], %s238
          %s240 = sand.u32 %s92, 1
          %s241 = smul.addr %s240, 256
          %s242 = scalar_lea.vmem [#allocation8], %s241
          %s243 = smul.u32 2, %s26
          %s245 = ssub.s32 4096, 4096
          %246 = vsyncadd %s239, %s245
          %s247 = smul.addr %s243, 64
          %s248 = scalar_lea.hbm %s2, %s247
          %s249 = sshll.u32 %s242, 4
          %s250 = int_to_ptr.vmem [resolvable:$true] %s249
          %255 = dma.hbm_to_vmem [thread:$0]  %s248, 4096, %s250, %s239, 384, 128, 8
        $region28: #{moco_contrastive_head.1} parent=23 // pred_fallthru
          _
      $region24: #{moco_contrastive_head.1} parent=5 // pred_fallthru
        _
      %p256 = scmp.le.s32.totalorder 1, %s18
      %p257 = scmp.lt.s32.totalorder %s18, 4
      %p258 = pnand %p256, %p257
      %p259 = pneg %p258
      // Predicated region
      $region29: #{moco_contrastive_head.1} parent=5 // pred_check
        _
      $region30: #{moco_contrastive_head.1} parent=5 // pred_check_branch
        %261 = sbr.rel (%p258) target = $region32
      $region31: #{moco_contrastive_head.1} parent=5 // pred_region
        %s262 = ssub.s32 %s18, 1
        // Predicated region
        $region33: #{moco_contrastive_head.1} parent=31 // pred_check
          %p263 = pneg %p56
        $region34: #{moco_contrastive_head.1} parent=31 // pred_check_branch
          %265 = sbr.rel (%p263) target = $region36
        $region35: #{moco_contrastive_head.1} parent=31 // pred_region
          %266 = dma.done [#allocation4], 256
        $region36: #{moco_contrastive_head.1} parent=31 // pred_fallthru
          _
        // Predicated region
        $region37: #{moco_contrastive_head.1} parent=31 // pred_check
          %p267 = pneg %p82
        $region38: #{moco_contrastive_head.1} parent=31 // pred_check_branch
          %269 = sbr.rel (%p267) target = $region40
        $region39: #{moco_contrastive_head.1} parent=31 // pred_region
          %270 = dma.done [#allocation7], 256
        $region40: #{moco_contrastive_head.1} parent=31 // pred_fallthru
          _
        %s271 = sand.u32 %s23, 1
        %s272 = scalar_lea.sflag [#allocation4], %s271
        %s273 = sand.u32 %s95, 1
        %s274 = smul.addr %s273, 256
        %s275 = scalar_lea.vmem [#allocation8], %s274
        // Predicated region
        $region41: #{moco_contrastive_head.1} parent=31 // pred_check
          %p276 = pneg %p108
        $region42: #{moco_contrastive_head.1} parent=31 // pred_check_branch
          %278 = sbr.rel (%p276) target = $region44
        $region43: #{moco_contrastive_head.1} parent=31 // pred_region
          %279 = dma.done %s272, 4096
        $region44: #{moco_contrastive_head.1} parent=31 // pred_fallthru
          _
        %p280 = pneg %p56
        %p281 = pneg %p53
        %p282 = pneg %p82
        %p283 = pneg %p79
        %s284 = sand.u32 %s23, 1
        %s285 = scalar_lea.sflag [#allocation4], %s284
        %s286 = sand.u32 %s95, 1
        %s287 = smul.addr %s286, 256
        %s288 = scalar_lea.vmem [#allocation8], %s287
        %p289 = pneg %p108
        %p290 = pneg %p105
        %p291 = pneg %p134
        %p292 = pneg %p131
        %p293 = scmp.lt.s32.totalorder %s27, 0
        %s294 = scalar_select %p293, %s27, 0
        %s295 = smul.addr %s294, 8
        %s296 = scalar_lea.vmem %s3, %s295
        %p297 = pneg %p162
        %p298 = pneg %p159
        %s299 = sand.u32 %s149, 1
        %s300 = scalar_lea.sflag [#allocation5], %s299
        %s301 = sand.u32 %s149, 1
        %s302 = smul.addr %s301, 16
        %s303 = scalar_lea.vmem [#allocation9], %s302
        %p304 = pneg %p188
        %p305 = pneg %p185
        %s306 = smul.u32 2, %s28
        %p307 = scmp.lt.s32.totalorder %s27, 0
        %s308 = scalar_select %p307, %s27, 0
        %s309 = smul.addr %s308, 8
        %s310 = scalar_lea.vmem %s3, %s309
        %s311 = smul.u32 2, %s28
        %p312 = scmp.eq.s32.totalorder %s28, 0
        // Predicated region
        $region45: #{moco_contrastive_head.1} parent=31 // pred_check
          %p313 = pneg %p312
        $region46: #{moco_contrastive_head.1} parent=31 // pred_check_branch
          %315 = sbr.rel (%p313) target = $region48
        $region47: #{moco_contrastive_head.1} parent=31 // pred_region
          %v316 = vld [vmem:[#allocation3] sm:$0xff]
          %v317 = vld [vmem:[#allocation3 + $0x8] sm:$0xff]
          %v318 = vld [vmem:[#allocation6] sm:$0xff]
          %v319 = vld [vmem:[#allocation6 + $0x8] sm:$0xff]
          %v320 = vmul.f32 %v316, %v316
          %v321 = vmul.f32 %v317, %v317
          %v322 = vadd.f32 %v320, %v321
          %323 = vadd.xlane.f32.xlu0 %v322
          %v324 = vpop.xlane.xlu0 %323
          %v325 = vmax.f32 %v324, 1e-24
          %v326 = vrsqrt.pop %v325
          %v327 = vmul.f32 %v316, %v326
          %v328 = vmul.f32 %v317, %v326
          %v329 = vmul.f32 %v318, %v318
          %v330 = vmul.f32 %v319, %v319
          %v331 = vadd.f32 %v329, %v330
          %332 = vadd.xlane.f32.xlu0 %v331
          %v333 = vpop.xlane.xlu0 %332
          %v334 = vmax.f32 %v333, 1e-24
          %v335 = vrsqrt.pop %v334
          %v336 = vmul.f32 %v318, %v335
          %v337 = vmul.f32 %v319, %v335
          %v338 = vmul.f32 %v327, %v336
          %v339 = vmul.f32 %v328, %v337
          %v340 = vadd.f32 %v338, %v339
          %341 = vadd.xlane.f32.xlu0 %v340
          %v342 = vpop.xlane.xlu0 %341
          %v343 = vmul.f32 %v342, 14.285714
          %vm344 = vcmask 7168
          %345 = vst.msk [vmem:[%s310] sm:$0xff] %vm344, %v343
          %v346 = vpack.c.bf16 %v336, %v336
          %v347 = vpack.c.bf16 %v337, %v337
          %v350 = vunpack.c.l.b16 %v346
          %v351 = vunpack.c.l.b16 %v347
          %v352 = vpack.c.b16 %v351, %v350
          %354 = vst [vmem:[#allocation10] sm:$0xff] %v352
          %v355 = vmul.f32 %v327, 14.285714
          %v356 = vmul.f32 %v328, 14.285714
          %v357 = vpack.c.bf16 %v355, %v355
          %v358 = vpack.c.bf16 %v356, %v356
          %v361 = vunpack.c.l.b16 %v357
          %v362 = vunpack.c.l.b16 %v358
          %v363 = vpack.c.b16 %v362, %v361
          %365 = vst [vmem:[#allocation2] sm:$0xff] %v363
        $region48: #{moco_contrastive_head.1} parent=31 // pred_fallthru
          _
        %v366 = vld [vmem:[#allocation2] sm:$0xff]
        %v367 = vld [vmem:[%s275] sm:$0xff]
        %v368 = vld [vmem:[%s275 + $0x8] sm:$0xff]
        %v369 = vld [vmem:[%s275 + $0x10] sm:$0xff]
        %v370 = vld [vmem:[%s275 + $0x18] sm:$0xff]
        %v371 = vld [vmem:[%s275 + $0x20] sm:$0xff]
        %v372 = vld [vmem:[%s275 + $0x28] sm:$0xff]
        %v373 = vld [vmem:[%s275 + $0x30] sm:$0xff]
        %v374 = vld [vmem:[%s275 + $0x38] sm:$0xff]
        %v375 = vld [vmem:[%s275 + $0x40] sm:$0xff]
        %v376 = vld [vmem:[%s275 + $0x48] sm:$0xff]
        %v377 = vld [vmem:[%s275 + $0x50] sm:$0xff]
        %v378 = vld [vmem:[%s275 + $0x58] sm:$0xff]
        %v379 = vld [vmem:[%s275 + $0x60] sm:$0xff]
        %v380 = vld [vmem:[%s275 + $0x68] sm:$0xff]
        %v381 = vld [vmem:[%s275 + $0x70] sm:$0xff]
        %v382 = vld [vmem:[%s275 + $0x78] sm:$0xff]
        %v383 = vld [vmem:[%s275 + $0x80] sm:$0xff]
        %v384 = vld [vmem:[%s275 + $0x88] sm:$0xff]
        %v385 = vld [vmem:[%s275 + $0x90] sm:$0xff]
        %v386 = vld [vmem:[%s275 + $0x98] sm:$0xff]
        %v387 = vld [vmem:[%s275 + $0xa0] sm:$0xff]
        %v388 = vld [vmem:[%s275 + $0xa8] sm:$0xff]
        %v389 = vld [vmem:[%s275 + $0xb0] sm:$0xff]
        %v390 = vld [vmem:[%s275 + $0xb8] sm:$0xff]
        %v391 = vld [vmem:[%s275 + $0xc0] sm:$0xff]
        %v392 = vld [vmem:[%s275 + $0xc8] sm:$0xff]
        %v393 = vld [vmem:[%s275 + $0xd0] sm:$0xff]
        %v394 = vld [vmem:[%s275 + $0xd8] sm:$0xff]
        %v395 = vld [vmem:[%s275 + $0xe0] sm:$0xff]
        %v396 = vld [vmem:[%s275 + $0xe8] sm:$0xff]
        %v397 = vld [vmem:[%s275 + $0xf0] sm:$0xff]
        %v398 = vld [vmem:[%s275 + $0xf8] sm:$0xff]
        %v400 = vunpack.c.l.b16 %v366
        %v401 = vunpack.c.h.b16 %v366
        %v402 = vpack.c.b16 %v400, %v400
        %v403 = vpack.c.b16 %v401, %v401
        %v438 = vunpack.c.l.b16 %v367
        %v439 = vunpack.c.h.b16 %v367
        %v440 = vunpack.c.l.b16 %v368
        %v441 = vunpack.c.h.b16 %v368
        %v442 = vunpack.c.l.b16 %v369
        %v443 = vunpack.c.h.b16 %v369
        %v444 = vunpack.c.l.b16 %v370
        %v445 = vunpack.c.h.b16 %v370
        %v446 = vunpack.c.l.b16 %v371
        %v447 = vunpack.c.h.b16 %v371
        %v448 = vunpack.c.l.b16 %v372
        %v449 = vunpack.c.h.b16 %v372
        %v450 = vunpack.c.l.b16 %v373
        %v451 = vunpack.c.h.b16 %v373
        %v452 = vunpack.c.l.b16 %v374
        %v453 = vunpack.c.h.b16 %v374
        %v454 = vunpack.c.l.b16 %v375
        %v455 = vunpack.c.h.b16 %v375
        %v456 = vunpack.c.l.b16 %v376
        %v457 = vunpack.c.h.b16 %v376
        %v458 = vunpack.c.l.b16 %v377
        %v459 = vunpack.c.h.b16 %v377
        %v460 = vunpack.c.l.b16 %v378
        %v461 = vunpack.c.h.b16 %v378
        %v462 = vunpack.c.l.b16 %v379
        %v463 = vunpack.c.h.b16 %v379
        %v464 = vunpack.c.l.b16 %v380
        %v465 = vunpack.c.h.b16 %v380
        %v466 = vunpack.c.l.b16 %v381
        %v467 = vunpack.c.h.b16 %v381
        %v468 = vunpack.c.l.b16 %v382
        %v469 = vunpack.c.h.b16 %v382
        %v470 = vunpack.c.l.b16 %v383
        %v471 = vunpack.c.h.b16 %v383
        %v472 = vunpack.c.l.b16 %v384
        %v473 = vunpack.c.h.b16 %v384
        %v474 = vunpack.c.l.b16 %v385
        %v475 = vunpack.c.h.b16 %v385
        %v476 = vunpack.c.l.b16 %v386
        %v477 = vunpack.c.h.b16 %v386
        %v478 = vunpack.c.l.b16 %v387
        %v479 = vunpack.c.h.b16 %v387
        %v480 = vunpack.c.l.b16 %v388
        %v481 = vunpack.c.h.b16 %v388
        %v482 = vunpack.c.l.b16 %v389
        %v483 = vunpack.c.h.b16 %v389
        %v484 = vunpack.c.l.b16 %v390
        %v485 = vunpack.c.h.b16 %v390
        %v486 = vunpack.c.l.b16 %v391
        %v487 = vunpack.c.h.b16 %v391
        %v488 = vunpack.c.l.b16 %v392
        %v489 = vunpack.c.h.b16 %v392
        %v490 = vunpack.c.l.b16 %v393
        %v491 = vunpack.c.h.b16 %v393
        %v492 = vunpack.c.l.b16 %v394
        %v493 = vunpack.c.h.b16 %v394
        %v494 = vunpack.c.l.b16 %v395
        %v495 = vunpack.c.h.b16 %v395
        %v496 = vunpack.c.l.b16 %v396
        %v497 = vunpack.c.h.b16 %v396
        %v498 = vunpack.c.l.b16 %v397
        %v499 = vunpack.c.h.b16 %v397
        %v500 = vunpack.c.l.b16 %v398
        %v501 = vunpack.c.h.b16 %v398
        %v502 = vpack.c.b16 %v440, %v438
        %v503 = vpack.c.b16 %v441, %v439
        %v504 = vpack.c.b16 %v444, %v442
        %v505 = vpack.c.b16 %v445, %v443
        %v506 = vpack.c.b16 %v448, %v446
        %v507 = vpack.c.b16 %v449, %v447
        %v508 = vpack.c.b16 %v452, %v450
        %v509 = vpack.c.b16 %v453, %v451
        %v510 = vpack.c.b16 %v456, %v454
        %v511 = vpack.c.b16 %v457, %v455
        %v512 = vpack.c.b16 %v460, %v458
        %v513 = vpack.c.b16 %v461, %v459
        %v514 = vpack.c.b16 %v464, %v462
        %v515 = vpack.c.b16 %v465, %v463
        %v516 = vpack.c.b16 %v468, %v466
        %v517 = vpack.c.b16 %v469, %v467
        %v518 = vpack.c.b16 %v472, %v470
        %v519 = vpack.c.b16 %v473, %v471
        %v520 = vpack.c.b16 %v476, %v474
        %v521 = vpack.c.b16 %v477, %v475
        %v522 = vpack.c.b16 %v480, %v478
        %v523 = vpack.c.b16 %v481, %v479
        %v524 = vpack.c.b16 %v484, %v482
        %v525 = vpack.c.b16 %v485, %v483
        %v526 = vpack.c.b16 %v488, %v486
        %v527 = vpack.c.b16 %v489, %v487
        %v528 = vpack.c.b16 %v492, %v490
        %v529 = vpack.c.b16 %v493, %v491
        %v530 = vpack.c.b16 %v496, %v494
        %v531 = vpack.c.b16 %v497, %v495
        %v532 = vpack.c.b16 %v500, %v498
        %v533 = vpack.c.b16 %v501, %v499
        %566 = vmatprep.subr.bf16.mxu0 %v517
        %567 = vmatpush1.bf16.msra.mxu0 %v516
        %568 = vmatprep.subr.bf16.mxu0 %v515
        %569 = vmatpush1.bf16.msra.mxu0 %v514
        %570 = vmatprep.subr.bf16.mxu0 %v513
        %571 = vmatpush1.bf16.msra.mxu0 %v512
        %572 = vmatprep.subr.bf16.mxu0 %v511
        %573 = vmatpush1.bf16.msra.mxu0 %v510
        %574 = vmatprep.subr.bf16.mxu0 %v509
        %575 = vmatpush1.bf16.msra.mxu0 %v508
        %576 = vmatprep.subr.bf16.mxu0 %v507
        %577 = vmatpush1.bf16.msra.mxu0 %v506
        %578 = vmatprep.subr.bf16.mxu0 %v505
        %579 = vmatpush1.bf16.msra.mxu0 %v504
        %580 = vmatprep.subr.bf16.mxu0 %v503
        %581 = vmatpush1.bf16.msra.mxu0 %v502
        %582 = vmatprep.subr.bf16.mxu0 %v533
        %583 = vmatpush2.bf16.msra.mxu0 %v532
        %584 = vmatprep.subr.bf16.mxu0 %v531
        %585 = vmatpush2.bf16.msra.mxu0 %v530
        %586 = vmatprep.subr.bf16.mxu0 %v529
        %587 = vmatpush2.bf16.msra.mxu0 %v528
        %588 = vmatprep.subr.bf16.mxu0 %v527
        %589 = vmatpush2.bf16.msra.mxu0 %v526
        %590 = vmatprep.subr.bf16.mxu0 %v525
        %591 = vmatpush2.bf16.msra.mxu0 %v524
        %592 = vmatprep.subr.bf16.mxu0 %v523
        %593 = vmatpush2.bf16.msra.mxu0 %v522
        %594 = vmatprep.subr.bf16.mxu0 %v521
        %595 = vmatpush2.bf16.msra.mxu0 %v520
        %596 = vmatprep.subr.bf16.mxu0 %v519
        %597 = vmatpush2.bf16.msra.mxu0 %v518
        %598 = vmatprep.mubr.bf16.mxu0 %v403
        %599 = vmatmul.mubr.bf16.gmra.mxu0 %v402
        %v600 = vpop.f32.mrf.mxu0
        %v601 = vadd.f32 0.0, %v600
        %v602 = vpop.f32.mrf.mxu0
        %v603 = vadd.f32 0.0, %v602
        %v604 = vpop.f32.mrf.mxu0
        %v605 = vpop.f32.mrf.mxu0
        %606 = vdwg.mxu0
        %607 = vst [vmem:[%s303] sm:$0xff] %v601
        %608 = vst [vmem:[%s303 + $0x8] sm:$0xff] %v603
        %p609 = scmp.lt.s32.totalorder %s27, 0
        %s610 = scalar_select %p609, %s27, 0
        %s611 = smul.addr %s610, 8
        %s612 = scalar_lea.vmem %s3, %s611
        %s613 = sand.u32 %s149, 1
        %s614 = scalar_lea.sflag [#allocation5], %s613
        %s615 = sand.u32 %s149, 1
        %s616 = smul.addr %s615, 16
        %s617 = scalar_lea.vmem [#allocation9], %s616
        // Predicated region
        $region49: #{moco_contrastive_head.1} parent=31 // pred_check
          %p618 = pneg %p131
        $region50: #{moco_contrastive_head.1} parent=31 // pred_check_branch
          %620 = sbr.rel (%p618) target = $region52
        $region51: #{moco_contrastive_head.1} parent=31 // pred_region
          _
        $region52: #{moco_contrastive_head.1} parent=31 // pred_fallthru
          _
        // Predicated region
        $region53: #{moco_contrastive_head.1} parent=31 // pred_check
          %p621 = pneg %p159
        $region54: #{moco_contrastive_head.1} parent=31 // pred_check_branch
          %623 = sbr.rel (%p621) target = $region56
        $region55: #{moco_contrastive_head.1} parent=31 // pred_region
          %s624 = smul.u32 2, %s28
          %s626 = ssub.s32 256, 256
          %627 = vsyncadd %s614, %s626
          %s628 = smul.addr %s27, 6
          %s629 = sadd.s32 %s624, %s628
          %s630 = smul.addr %s629, 128
          %s631 = scalar_lea.hbm %s4, %s630
          %s633 = sshll.u32 %s617, 4
          %s634 = int_to_ptr.vmem [resolvable:$true] %s633
          %636 = dma.vmem_to_hbm [thread:$0]  %s634, 256, %s631, %s614
        $region56: #{moco_contrastive_head.1} parent=31 // pred_fallthru
          _
        // Predicated region
        $region57: #{moco_contrastive_head.1} parent=31 // pred_check
          %p637 = pneg %p185
        $region58: #{moco_contrastive_head.1} parent=31 // pred_check_branch
          %639 = sbr.rel (%p637) target = $region60
        $region59: #{moco_contrastive_head.1} parent=31 // pred_region
          %s641 = ssub.s32 128, 128
          %642 = vsyncadd [#allocation11], %s641
          %s643 = smul.addr %s27, 2
          %s644 = smul.addr %s643, 64
          %s645 = scalar_lea.hbm %s5, %s644
          %s647 = sshll.u32 [#allocation10], 4
          %s648 = int_to_ptr.vmem [resolvable:$true] %s647
          %650 = dma.vmem_to_hbm [thread:$0]  %s648, 128, %s645, [#allocation11]
        $region60: #{moco_contrastive_head.1} parent=31 // pred_fallthru
          _
        // Predicated region
        $region61: #{moco_contrastive_head.1} parent=31 // pred_check
          %p651 = pneg %p131
        $region62: #{moco_contrastive_head.1} parent=31 // pred_check_branch
          %653 = sbr.rel (%p651) target = $region64
        $region63: #{moco_contrastive_head.1} parent=31 // pred_region
          %p654 = scmp.lt.s32.totalorder %s27, 0
          %s655 = scalar_select %p654, %s27, 0
          %s656 = smul.addr %s655, 8
          %s657 = scalar_lea.vmem %s3, %s656
        $region64: #{moco_contrastive_head.1} parent=31 // pred_fallthru
          _
        // Predicated region
        $region65: #{moco_contrastive_head.1} parent=31 // pred_check
          %p658 = pneg %p185
        $region66: #{moco_contrastive_head.1} parent=31 // pred_check_branch
          %660 = sbr.rel (%p658) target = $region68
        $region67: #{moco_contrastive_head.1} parent=31 // pred_region
          %661 = dma.done [#allocation11], 128
        $region68: #{moco_contrastive_head.1} parent=31 // pred_fallthru
          _
      $region32: #{moco_contrastive_head.1} parent=5 // pred_fallthru
        _
      %p662 = scmp.le.s32.totalorder 2, %s18
      // Predicated region
      $region69: #{moco_contrastive_head.1} parent=5 // pred_check
        %p663 = pneg %p662
      $region70: #{moco_contrastive_head.1} parent=5 // pred_check_branch
        %665 = sbr.rel (%p663) target = $region72
      $region71: #{moco_contrastive_head.1} parent=5 // pred_region
        %s666 = ssub.s32 %s18, 2
        // Predicated region
        $region73: #{moco_contrastive_head.1} parent=71 // pred_check
          %p667 = pneg %p165
        $region74: #{moco_contrastive_head.1} parent=71 // pred_check_branch
          %669 = sbr.rel (%p667) target = $region76
        $region75: #{moco_contrastive_head.1} parent=71 // pred_region
          %s670 = sand.u32 %s150, 1
          %s671 = scalar_lea.sflag [#allocation5], %s670
          %s672 = sand.u32 %s150, 1
          %s673 = smul.addr %s672, 16
          %s674 = scalar_lea.vmem [#allocation9], %s673
          %675 = dma.done %s671, 256
        $region76: #{moco_contrastive_head.1} parent=71 // pred_fallthru
          _
      $region72: #{moco_contrastive_head.1} parent=5 // pred_fallthru
        _
    $region6: #{moco_contrastive_head.1} parent=1 // loop_footer
      %s22 = sadd.s32 1, %s18
    $region7: #{moco_contrastive_head.1} parent=1 // loop_footer_branch
      %17 = sbr.rel target = $region3
    $region8: #{moco_contrastive_head.1} parent=1 // loop_exit
      _
    %676 = vsyncpa [#allocation4], 1
    %s677 = scalar_lea.sflag [#allocation4], 1
    %678 = vsyncpa %s677, 1
    %679 = vsyncpa [#allocation7], 1
    %680 = vsyncpa [#allocation5], 1
    %s681 = scalar_lea.sflag [#allocation5], 1
    %682 = vsyncpa %s681, 1
    %683 = vsyncpa [#allocation11], 1

</llo_original>
